<compile_context>
chip_gen: v5e
topology: v5e:2x2
jax: 0.10.0
libtpu: 0.0.40
codegen_flags: <defaults>
</compile_context>

<pallas_src>
import jax
import jax.numpy as jnp
from jax.experimental import pallas as pl
from jax.experimental.pallas import tpu as pltpu


# ----------------------------------------------------------------------------
# Kernels
# ----------------------------------------------------------------------------

def lstm_text_step_kernel(xh1_ref, c_ref, w_gates1_ref, wbh_ref, out_ref):
    """One LSTMCell step + fused (i2o o fc) head.

    xh1_ref:      (Bp, D+H+1) bf16   [x ; h ; 1]  (ones column folds the gate bias)
    c_ref:        (Bp, H)     f32
    w_gates1_ref: (D+H+1, 4H) bf16   [W_ih^T ; W_hh^T ; b_ih+b_hh], gate order i,f,g,o
    wbh_ref:      (H+1, 2)    f32    [W_i2o @ W_fc ; b_i2o @ W_fc + b_fc]
    out_ref:      (Bp, 128)   f32    lanes [0:H]=h_new, [H:2H]=c_new, [2H:2H+2]=logits
    """
    H = c_ref.shape[1]

    # Single fused gate matmul on the MXU (bf16 operands, f32 accumulation).
    gates = jnp.dot(xh1_ref[...], w_gates1_ref[...],
                    preferred_element_type=jnp.float32)          # (Bp, 4H) f32

    # One full-vreg sigmoid + one full-vreg tanh; lane-select the g-gate quarter.
    lane = jax.lax.broadcasted_iota(jnp.int32, gates.shape, 1)
    is_g = (lane >= 2 * H) & (lane < 3 * H)
    act = jnp.where(is_g, jnp.tanh(gates), jax.nn.sigmoid(gates))

    i_g = act[:, 0 * H:1 * H]
    f_g = act[:, 1 * H:2 * H]
    g_g = act[:, 2 * H:3 * H]
    o_g = act[:, 3 * H:4 * H]

    # Elementwise cell/hidden update in f32 (v5e-safe).
    c_new = f_g * c_ref[...] + i_g * g_g
    h_new = o_g * jnp.tanh(c_new)

    # Fused head: logits = h_new @ W_head + b_head   (tiny f32 matmul).
    logits = jnp.dot(h_new, wbh_ref[:H, :],
                     preferred_element_type=jnp.float32) + wbh_ref[H:, :]

    # Lane-dense packed output slab; padding lanes [2H+2:] are never read.
    out_ref[:, 0:H] = h_new
    out_ref[:, H:2 * H] = c_new
    out_ref[:, 2 * H:2 * H + 2] = logits


def lstm_text_seq_kernel(x1_ref, wx1_ref, wh_ref, wbh_ref, hc0_ref,
                         out_ref, h_scr, c_scr):
    """Whole-sequence LSTM_Text: one grid step per timestep, weights VMEM-resident.

    x1_ref:  (Bp, D+1)  bf16   per-step [x_t ; 1] (streamed block)
    wx1_ref: (D+1, 4H)  bf16   [W_ih^T ; b_ih+b_hh]      (resident)
    wh_ref:  (H, 4H)    bf16   W_hh^T                     (resident)
    wbh_ref: (H+1, 2)   f32    fused head [W_head ; b_head] (resident)
    hc0_ref: (Bp, 2H)   f32    initial [h0 ; c0]          (resident)
    out_ref: (Bp, 128)  f32    per-step slab [h_t ; c_t ; logits_t ; pad]
    h_scr/c_scr: VMEM (Bp, H) f32 recurrent state carried across grid steps.
    """
    H = h_scr.shape[1]
    t = pl.program_id(0)

    @pl.when(t == 0)
    def _():
        h_scr[...] = hc0_ref[:, :H]
        c_scr[...] = hc0_ref[:, H:]

    h = h_scr[...]
    c = c_scr[...]

    gates = (jnp.dot(x1_ref[...], wx1_ref[...], preferred_element_type=jnp.float32)
             + jnp.dot(h.astype(jnp.bfloat16), wh_ref[...],
                       preferred_element_type=jnp.float32))      # (Bp, 4H) f32

    lane = jax.lax.broadcasted_iota(jnp.int32, gates.shape, 1)
    is_g = (lane >= 2 * H) & (lane < 3 * H)
    act = jnp.where(is_g, jnp.tanh(gates), jax.nn.sigmoid(gates))

    i_g = act[:, 0 * H:1 * H]
    f_g = act[:, 1 * H:2 * H]
    g_g = act[:, 2 * H:3 * H]
    o_g = act[:, 3 * H:4 * H]

    c_new = f_g * c + i_g * g_g
    h_new = o_g * jnp.tanh(c_new)
    h_scr[...] = h_new
    c_scr[...] = c_new

    logits = jnp.dot(h_new, wbh_ref[:H, :],
                     preferred_element_type=jnp.float32) + wbh_ref[H:, :]

    out_ref[:, 0:H] = h_new
    out_ref[:, H:2 * H] = c_new
    out_ref[:, 2 * H:2 * H + 2] = logits


# ----------------------------------------------------------------------------
# Wrappers
# ----------------------------------------------------------------------------

def _pad_rows(a, rows):
    pad = rows - a.shape[0]
    return jnp.pad(a, ((0, pad), (0, 0))) if pad else a


def lstm_text_forward(x, hidden, cell, params):
    """Single-step forward, matching LSTM_Text.forward.

    Returns (logit1, logit2, hidden_new, cell_new).
    """
    B = x.shape[0]
    H = hidden.shape[1]
    Bp = max(8, ((B + 7) // 8) * 8)
    out_lanes = max(128, ((2 * H + 2 + 127) // 128) * 128)

    ones = jnp.ones((B, 1), jnp.float32)
    xh1 = _pad_rows(jnp.concatenate([x, hidden, ones], axis=1), Bp).astype(jnp.bfloat16)
    cell_p = _pad_rows(cell.astype(jnp.float32), Bp)

    vmem = pl.BlockSpec(memory_space=pltpu.MemorySpace.VMEM)
    out = pl.pallas_call(
        lstm_text_step_kernel,
        out_shape=jax.ShapeDtypeStruct((Bp, out_lanes), jnp.float32),
        in_specs=[vmem] * 4,
        out_specs=vmem,
    )(xh1, cell_p, params["w_gates1"], params["wb_head"])

    h_new = out[:B, :H]
    c_new = out[:B, H:2 * H]
    logit1 = out[:B, 2 * H:2 * H + 1]
    logit2 = out[:B, 2 * H + 1:2 * H + 2]
    return logit1, logit2, h_new, c_new


def lstm_text_forward_sequence(x_seq, hidden0, cell0, params):
    """Runs the cell over a whole sequence with the recurrence loop inside the kernel.

    x_seq: (T, B, D).  Returns (logit1_seq (T,B,1), logit2_seq (T,B,1), h_T, c_T).
    Semantically identical to calling LSTM_Text.forward T times.
    """
    T, B, D = x_seq.shape
    H = hidden0.shape[1]
    Bp = max(8, ((B + 7) // 8) * 8)
    out_lanes = max(128, ((2 * H + 2 + 127) // 128) * 128)

    ones = jnp.ones((T, B, 1), jnp.float32)
    x1 = jnp.concatenate([x_seq, ones], axis=2).astype(jnp.bfloat16)
    hc0 = jnp.concatenate([hidden0, cell0], axis=1).astype(jnp.float32)
    pad = Bp - B
    if pad:
        x1 = jnp.pad(x1, ((0, 0), (0, pad), (0, 0)))
        hc0 = jnp.pad(hc0, ((0, pad), (0, 0)))   # zero-padded rows cannot poison the scan

    out = pl.pallas_call(
        lstm_text_seq_kernel,
        out_shape=jax.ShapeDtypeStruct((T, Bp, out_lanes), jnp.float32),
        grid=(T,),
        in_specs=[
            pl.BlockSpec((None, Bp, D + 1), lambda t: (t, 0, 0)),  # streamed x_t
            pl.BlockSpec((D + 1, 4 * H), lambda t: (0, 0)),        # resident weights
            pl.BlockSpec((H, 4 * H), lambda t: (0, 0)),
            pl.BlockSpec((H + 1, 2), lambda t: (0, 0)),
            pl.BlockSpec((Bp, 2 * H), lambda t: (0, 0)),           # resident h0/c0
        ],
        out_specs=pl.BlockSpec((None, Bp, out_lanes), lambda t: (t, 0, 0)),
        scratch_shapes=[pltpu.VMEM((Bp, H), jnp.float32),
                        pltpu.VMEM((Bp, H), jnp.float32)],
        compiler_params=pltpu.CompilerParams(dimension_semantics=("arbitrary",)),
    )(x1, params["wx1"], params["wh"], params["wb_head"], hc0)

    logit1 = out[:, :B, 2 * H:2 * H + 1]
    logit2 = out[:, :B, 2 * H + 1:2 * H + 2]
    h_T = out[T - 1, :B, :H]
    c_T = out[T - 1, :B, H:2 * H]
    return logit1, logit2, h_T, c_T


# ----------------------------------------------------------------------------
# Params (PyTorch-like init, pre-packed once into kernel layouts)
# ----------------------------------------------------------------------------

def init_params(key, input_size, hidden_size, share_size):
    D, H, S = input_size, hidden_size, share_size
    keys = jax.random.split(key, 10)

    def u(k, shape, bound):
        return jax.random.uniform(k, shape, jnp.float32, -bound, bound)

    kl = 1.0 / jnp.sqrt(H)     # nn.LSTMCell init bound
    w_ih = u(keys[0], (4 * H, D), kl)      # gate order i, f, g, o
    w_hh = u(keys[1], (4 * H, H), kl)
    b_ih = u(keys[2], (4 * H,), kl)
    b_hh = u(keys[3], (4 * H,), kl)

    ki2o = 1.0 / jnp.sqrt(H)
    kfc = 1.0 / jnp.sqrt(S)
    w_i2o = u(keys[4], (S, H), ki2o)       # nn.Linear(H, S) weight
    b_i2o = u(keys[5], (S,), ki2o)
    w_fc1 = u(keys[6], (1, S), kfc)
    b_fc1 = u(keys[7], (1,), kfc)
    w_fc2 = u(keys[8], (1, S), kfc)
    b_fc2 = u(keys[9], (1,), kfc)

    b_gates = (b_ih + b_hh)[None, :]                               # (1, 4H)

    # f32 master copies for the pure-JAX reference.
    ref = {
        "w_gates": jnp.concatenate([w_ih.T, w_hh.T], axis=0),      # (D+H, 4H)
        "b_gates": b_gates,
        "w_i2o": w_i2o.T, "b_i2o": b_i2o[None, :],                 # (H,S), (1,S)
        "w_fc": jnp.concatenate([w_fc1.T, w_fc2.T], axis=1),       # (S, 2)
        "b_fc": jnp.concatenate([b_fc1, b_fc2])[None, :],          # (1, 2)
    }

    # Exact head fusion, composed in f32.
    w_head = ref["w_i2o"] @ ref["w_fc"]                            # (H, 2)
    b_head = ref["b_i2o"] @ ref["w_fc"] + ref["b_fc"]              # (1, 2)

    kern = {
        # step kernel: [x ; h ; 1] @ w_gates1 (bias row folded in)
        "w_gates1": jnp.concatenate([ref["w_gates"], b_gates],
                                    axis=0).astype(jnp.bfloat16),  # (D+H+1, 4H)
        # seq kernel: split x-path (bias folded) and h-path weights
        "wx1": jnp.concatenate([w_ih.T, b_gates], axis=0).astype(jnp.bfloat16),  # (D+1, 4H)
        "wh": w_hh.T.astype(jnp.bfloat16),                                        # (H, 4H)
        # fused head kept in f32 (tiny matmul, exact bias)
        "wb_head": jnp.concatenate([w_head, b_head], axis=0),                     # (H+1, 2)
    }
    return kern, ref


# ----------------------------------------------------------------------------
# Pure-JAX f32 reference (mirrors torch.nn.LSTMCell + Linear semantics)
# ----------------------------------------------------------------------------

def reference_forward(x, h, c, ref):
    H = h.shape[1]
    gates = jnp.concatenate([x, h], axis=1) @ ref["w_gates"] + ref["b_gates"]
    i = jax.nn.sigmoid(gates[:, 0 * H:1 * H])
    f = jax.nn.sigmoid(gates[:, 1 * H:2 * H])
    g = jnp.tanh(gates[:, 2 * H:3 * H])
    o = jax.nn.sigmoid(gates[:, 3 * H:4 * H])
    c_new = f * c + i * g
    h_new = o * jnp.tanh(c_new)
    share = h_new @ ref["w_i2o"] + ref["b_i2o"]
    logits = share @ ref["w_fc"] + ref["b_fc"]
    return logits[:, 0:1], logits[:, 1:2], h_new, c_new


if __name__ == "__main__":
    B, INPUT_SIZE, HIDDEN_SIZE, SHARE_SIZE, T = 2, 16, 32, 16, 8

    key = jax.random.PRNGKey(0)
    k_p, k_x, k_h, k_c, k_xs = jax.random.split(key, 5)

    kern_params, ref_params = init_params(k_p, INPUT_SIZE, HIDDEN_SIZE, SHARE_SIZE)
    x = jax.random.normal(k_x, (B, INPUT_SIZE), jnp.float32)
    hidden = jax.random.normal(k_h, (B, HIDDEN_SIZE), jnp.float32)
    cell = jax.random.normal(k_c, (B, HIDDEN_SIZE), jnp.float32)

    # --- single-step kernel (module forward) ---
    logit1, logit2, h_new, c_new = jax.block_until_ready(
        lstm_text_forward(x, hidden, cell, kern_params))

    r1, r2, rh, rc = reference_forward(x, hidden, cell, ref_params)
    # bf16 MXU operands (f32 accumulation) => loosened tolerance vs. pure f32.
    assert jnp.allclose(logit1, r1, atol=2e-2, rtol=2e-2)
    assert jnp.allclose(logit2, r2, atol=2e-2, rtol=2e-2)
    assert jnp.allclose(h_new, rh, atol=2e-2, rtol=2e-2)
    assert jnp.allclose(c_new, rc, atol=2e-2, rtol=2e-2)

    # --- sequence kernel (recurrence loop inside the kernel) ---
    x_seq = jax.random.normal(k_xs, (T, B, INPUT_SIZE), jnp.float32)
    sl1, sl2, sh, sc = jax.block_until_ready(
        lstm_text_forward_sequence(x_seq, hidden, cell, kern_params))

    rh_t, rc_t = hidden, cell
    rl1_list, rl2_list = [], []
    for t in range(T):
        r1t, r2t, rh_t, rc_t = reference_forward(x_seq[t], rh_t, rc_t, ref_params)
        rl1_list.append(r1t)
        rl2_list.append(r2t)
    rl1 = jnp.stack(rl1_list)
    rl2 = jnp.stack(rl2_list)

    assert jnp.allclose(sl1, rl1, atol=5e-2, rtol=5e-2)
    assert jnp.allclose(sl2, rl2, atol=5e-2, rtol=5e-2)
    assert jnp.allclose(sh, rh_t, atol=5e-2, rtol=5e-2)
    assert jnp.allclose(sc, rc_t, atol=5e-2, rtol=5e-2)

    print("KERNEL_OK")
</pallas_src>

<mosaic_0001>
module attributes {stable_mosaic.version = 11 : i64} {
  func.func @lstm_text_step_kernel(%arg0: memref<8x49xbf16, #tpu.memory_space<vmem>>, %arg1: memref<8x32xf32, #tpu.memory_space<vmem>>, %arg2: memref<49x128xbf16, #tpu.memory_space<vmem>>, %arg3: memref<33x2xf32, #tpu.memory_space<vmem>>, %arg4: memref<8x128xf32, #tpu.memory_space<vmem>>) attributes {dimension_semantics = [], scalar_prefetch = 0 : i64, scratch_operands = 0 : i64, tpu.core_type = #tpu.core_type<tc>} {
    %c0 = arith.constant 0 : index
    %c0_0 = arith.constant 0 : index
    %0 = vector.load %arg0[%c0, %c0_0] : memref<8x49xbf16, #tpu.memory_space<vmem>>, vector<8x49xbf16>
    %c0_1 = arith.constant 0 : index
    %c0_2 = arith.constant 0 : index
    %1 = vector.load %arg2[%c0_1, %c0_2] : memref<49x128xbf16, #tpu.memory_space<vmem>>, vector<49x128xbf16>
    %cst = arith.constant dense<0.000000e+00> : vector<8x128xf32>
    %2 = tpu.matmul %0, %1, %cst {dimension_numbers = #tpu.dot_dimension_numbers<[1], [0], [0], [1], [0, 0, 1, 1], [], []>} : vector<8x49xbf16>, vector<49x128xbf16>, vector<8x128xf32> -> vector<8x128xf32>
    %3 = tpu.iota {dimensions = array<i32: 1>} : vector<8x128xi32>
    %c64_i32 = arith.constant 64 : i32
    %4 = vector.broadcast %c64_i32 : i32 to vector<8x128xi32>
    %5 = arith.cmpi sge, %3, %4 : vector<8x128xi32>
    %c96_i32 = arith.constant 96 : i32
    %6 = vector.broadcast %c96_i32 : i32 to vector<8x128xi32>
    %7 = arith.cmpi slt, %3, %6 : vector<8x128xi32>
    %8 = arith.andi %5, %7 : vector<8x128xi1>
    %9 = math.tanh %2 : vector<8x128xf32>
    %10 = arith.negf %2 : vector<8x128xf32>
    %11 = math.exp %10 : vector<8x128xf32>
    %cst_3 = arith.constant 1.000000e+00 : f32
    %12 = vector.broadcast %cst_3 : f32 to vector<8x128xf32>
    %13 = arith.addf %12, %11 : vector<8x128xf32>
    %14 = arith.divf %12, %13 : vector<8x128xf32>
    %15 = arith.select %8, %9, %14 : vector<8x128xi1>, vector<8x128xf32>
    %16 = vector.extract_strided_slice %15 {offsets = [0, 0], sizes = [8, 32], strides = [1, 1]} : vector<8x128xf32> to vector<8x32xf32>
    %17 = vector.extract_strided_slice %15 {offsets = [0, 32], sizes = [8, 32], strides = [1, 1]} : vector<8x128xf32> to vector<8x32xf32>
    %18 = vector.extract_strided_slice %15 {offsets = [0, 64], sizes = [8, 32], strides = [1, 1]} : vector<8x128xf32> to vector<8x32xf32>
    %19 = vector.extract_strided_slice %15 {offsets = [0, 96], sizes = [8, 32], strides = [1, 1]} : vector<8x128xf32> to vector<8x32xf32>
    %c0_4 = arith.constant 0 : index
    %c0_5 = arith.constant 0 : index
    %20 = vector.load %arg1[%c0_4, %c0_5] : memref<8x32xf32, #tpu.memory_space<vmem>>, vector<8x32xf32>
    %21 = arith.mulf %17, %20 : vector<8x32xf32>
    %22 = arith.mulf %16, %18 : vector<8x32xf32>
    %23 = arith.addf %21, %22 : vector<8x32xf32>
    %24 = math.tanh %23 : vector<8x32xf32>
    %25 = arith.mulf %19, %24 : vector<8x32xf32>
    %c0_6 = arith.constant 0 : index
    %c0_7 = arith.constant 0 : index
    %26 = vector.load %arg3[%c0_6, %c0_7] : memref<33x2xf32, #tpu.memory_space<vmem>>, vector<32x2xf32>
    %cst_8 = arith.constant dense<0.000000e+00> : vector<8x2xf32>
    %27 = tpu.matmul %25, %26, %cst_8 {dimension_numbers = #tpu.dot_dimension_numbers<[1], [0], [0], [1], [0, 0, 1, 1], [], []>} : vector<8x32xf32>, vector<32x2xf32>, vector<8x2xf32> -> vector<8x2xf32>
    %c32 = arith.constant 32 : index
    %c0_9 = arith.constant 0 : index
    %28 = vector.load %arg3[%c32, %c0_9] : memref<33x2xf32, #tpu.memory_space<vmem>>, vector<1x2xf32>
    %29 = vector.broadcast %28 : vector<1x2xf32> to vector<8x2xf32>
    %30 = arith.addf %27, %29 : vector<8x2xf32>
    %c0_10 = arith.constant 0 : index
    %c0_11 = arith.constant 0 : index
    %31 = vector.load %arg4[%c0_10, %c0_11] : memref<8x128xf32, #tpu.memory_space<vmem>>, vector<8x32xf32>
    tpu.vector_store %arg4[%c0_10, %c0_11], %25 {strides = array<i32>} : memref<8x128xf32, #tpu.memory_space<vmem>>, vector<8x32xf32>,
    %c0_12 = arith.constant 0 : index
    %c32_13 = arith.constant 32 : index
    %32 = vector.load %arg4[%c0_12, %c32_13] : memref<8x128xf32, #tpu.memory_space<vmem>>, vector<8x32xf32>
    tpu.vector_store %arg4[%c0_12, %c32_13], %23 {strides = array<i32>} : memref<8x128xf32, #tpu.memory_space<vmem>>, vector<8x32xf32>,
    %c0_14 = arith.constant 0 : index
    %c64 = arith.constant 64 : index
    %33 = vector.load %arg4[%c0_14, %c64] : memref<8x128xf32, #tpu.memory_space<vmem>>, vector<8x2xf32>
    tpu.vector_store %arg4[%c0_14, %c64], %30 {strides = array<i32>} : memref<8x128xf32, #tpu.memory_space<vmem>>, vector<8x2xf32>,
    return
  }
}

</mosaic_0001>

<llo_original>
// kernel: tpu_custom_call.1
$region0: #{tpu_custom_call.1}
  #allocation0 [shape = 'u32[]', space=smem, size = 0x4, offset = 0x4, fixed_abs, tag = 'smem constant byte address 0x4 - core index']
  #allocation1 [shape = 'u32[72,128]{1,0:T(1,128)}', space=vmem, size = 0x9000, scoped, tag = 'internal scratch']
  %s0 = inlined_call_operand.vmem [shape: bf16[8,49], index: 0, kind: input, shape index: {}]
  %s1 = inlined_call_operand.vmem [shape: f32[8,32], index: 1, kind: input, shape index: {}]
  %s2 = inlined_call_operand.vmem [shape: bf16[49,128], index: 2, kind: input, shape index: {}]
  %s3 = inlined_call_operand.vmem [shape: f32[33,2], index: 3, kind: input, shape index: {}]
  %s4 = inlined_call_operand.hbm [shape: f32[8,128], index: 4, kind: output, shape index: {}]
  %s5 = sld [smem:[#allocation0]]
  $region26: #{tpu_custom_call.1} parent=0
    _
  %s7 = ssub.s32 1, %s5
  %s8 = scalar_select 0, %s7, %s5
  $region1: #{tpu_custom_call.1} parent=0
    #allocation2 [shape = 'u8[4096]{0}', space=vmem, size = 0x1000, scoped, tag = 'output window, operand 0, single buffered']
    #allocation3 [shape = 's32[1]{0}', space=sflag, size = 0x4, scoped, tag = 'scoped memory for tpu_custom_call.1']
    %9 = vsyncpa [#allocation3], 0
    // Predicated region
    $region2: #{tpu_custom_call.1} parent=1 // pred_check
      _
    $region3: #{tpu_custom_call.1} parent=1 // pred_check_branch
      %11 = sbr.rel (0) target = $region5
    $region4: #{tpu_custom_call.1} parent=1 // pred_region
      _
    $region5: #{tpu_custom_call.1} parent=1 // pred_fallthru
      _
    // Predicated region
    $region6: #{tpu_custom_call.1} parent=1 // pred_check
      _
    $region7: #{tpu_custom_call.1} parent=1 // pred_check_branch
      %13 = sbr.rel (0) target = $region9
    $region8: #{tpu_custom_call.1} parent=1 // pred_region
      _
    $region9: #{tpu_custom_call.1} parent=1 // pred_fallthru
      _
    // Predicated region
    $region10: #{tpu_custom_call.1} parent=1 // pred_check
      _
    $region11: #{tpu_custom_call.1} parent=1 // pred_check_branch
      %15 = sbr.rel (0) target = $region13
    $region12: #{tpu_custom_call.1} parent=1 // pred_region
      _
    $region13: #{tpu_custom_call.1} parent=1 // pred_fallthru
      _
    // Predicated region
    $region14: #{tpu_custom_call.1} parent=1 // pred_check
      _
    $region15: #{tpu_custom_call.1} parent=1 // pred_check_branch
      %17 = sbr.rel (0) target = $region17
    $region16: #{tpu_custom_call.1} parent=1 // pred_region
      _
    $region17: #{tpu_custom_call.1} parent=1 // pred_fallthru
      _
    %v19 = vld [vmem:[%s0] sm:$0xf]
    %v20 = vld [vmem:[%s2] sm:$0xf]
    %v21 = vld [vmem:[%s2 + $0x4] sm:$0xf]
    %v22 = vld [vmem:[%s2 + $0x8] sm:$0xf]
    %v23 = vld [vmem:[%s2 + $0xc] sm:$0xf]
    %v24 = vld [vmem:[%s2 + $0x10] sm:$0xf]
    %v25 = vld [vmem:[%s2 + $0x14] sm:$0xf]
    %v26 = vld [vmem:[%s2 + $0x18] sm:$0x1]
    %v34 = vunpack.c.l.b16 %v20
    %v35 = vunpack.c.l.b16 %v21
    %v36 = vunpack.c.l.b16 %v22
    %v37 = vunpack.c.l.b16 %v23
    %v38 = vunpack.c.l.b16 %v24
    %v39 = vunpack.c.l.b16 %v25
    %v40 = vunpack.c.l.b16 %v26
    %v41 = vpack.c.b16 %v35, %v34
    %v42 = vpack.c.b16 %v37, %v36
    %v43 = vpack.c.b16 %v39, %v38
    %v44 = vpack.c.b16 %v40, %v40
    %vm48 = vcmask 400384
    %v50 = vsel %vm48, %v19, 0
    %vm52 = vcmask 1040384
    %v53 = vsel 0, 4294967295, 65535
    %v54 = vsel %vm52, %v53, 0
    %v56 = vand.u32 %v44, %v54
    %58 = vmatpush.bf16.msra.mxu0 0
    %59 = vmatpush.bf16.msra.mxu0 0
    %60 = vmatpush.bf16.msra.mxu0 0
    %61 = vmatpush.bf16.msra.mxu0 0
    %62 = vmatpush.bf16.msra.mxu0 %v56
    %63 = vmatpush.bf16.msra.mxu0 %v43
    %64 = vmatpush.bf16.msra.mxu0 %v42
    %65 = vmatpush.bf16.msra.mxu0 %v41
    %66 = vmatmul.bf16.gmra.mxu0 %v50
    %v67 = vpop.f32.mrf.mxu0
    %v68 = vadd.f32 0.0, %v67
    %v69 = vpop.f32.mrf.mxu0
    %70 = vdwg.mxu0
    %v71 = vlaneseq
    %v72 = vand.u32 %v71, 127
    %vm73 = vcmp.ge.s32.totalorder %v72, 64
    %vm74 = vcmp.lt.s32.totalorder %v72, 96
    %vm75 = vmand %vm73, %vm74
    %v76 = vtanh.pop %v68
    %v77 = vxor.u32 %v68, 2147483648
    %v78 = vmul.f32 %v77, 1.442695
    %v79 = vpow.pop %v78
    %v80 = vadd.f32 %v79, 1.0
    %v81 = vrcp.pop %v80
    %v82 = vmul.f32 %v80, %v81
    %v83 = vsub.f32 1.0, %v82
    %v84 = vmul.f32 %v81, %v83
    %v85 = vadd.f32 %v81, %v84
    %vm86 = vweird.f32 %v80
    %vm87 = vweird.f32 %v81
    %vm88 = vmor %vm86, %vm87
    %v89 = vsel %vm88, %v81, %v85
    %v90 = vand.u32 2147483647, %v80
    %vm91 = vcmp.eq.f32.partialorder %v90, 8.507059e+37
    %v92 = vand.u32 %v80, 2147483648
    %v93 = vor.u32 1.1754944e-38, %v92
    %v94 = vsel %vm91, %v93, %v89
    %v95 = vmul.f32 1.0, %v94
    %v96 = vsel %vm75, %v76, %v95
    %v97 = vld [vmem:[%s1] sm:$0xff]
    %99 = vrot.lane.b32.xlu0 %v97, 32
    %v100 = vpop.permute.xlu0 %99
    %v102 = vmul.f32 %v96, %v100
    %104 = vrot.lane.b32.xlu0 %v96, 64
    %v105 = vpop.permute.xlu0 %104
    %v107 = vmul.f32 %v96, %v105
    %109 = vrot.lane.b32.xlu0 %v107, 32
    %v110 = vpop.permute.xlu0 %109
    %v112 = vadd.f32 %v102, %v110
    %v113 = vtanh.pop %v112
    %115 = vrot.lane.b32.xlu0 %v113, 64
    %v116 = vpop.permute.xlu0 %115
    %v118 = vmul.f32 %v96, %v116
    %v119 = vld [vmem:[%s3] sm:$0xff]
    %v120 = vld [vmem:[%s3 + $0x8] sm:$0xff]
    %v121 = vld [vmem:[%s3 + $0x10] sm:$0xff]
    %v122 = vld [vmem:[%s3 + $0x18] sm:$0xff]
    %v123 = vld [vmem:[%s3 + $0x20] sm:$0x1]
    %v124 = vperm.slane %v123, 0
    %126 = vrot.lane.b32.xlu0 %v118, 32
    %v127 = vpop.permute.xlu0 %126
    %vm128 = vcmask 261120
    %v129 = vsel %vm128, %v127, 0
    %131 = vmatpush.msra.mxu0 0.0
    %132 = vmatpush.msra.mxu0 0.0
    %133 = vmatpush.msra.mxu0 0.0
    %134 = vmatpush.msra.mxu0 0.0
    %135 = vmatpush.msra.mxu0 0.0
    %136 = vmatpush.msra.mxu0 0.0
    %137 = vmatpush.msra.mxu0 0.0
    %138 = vmatpush.msra.mxu0 0.0
    %139 = vmatpush.msra.mxu0 0.0
    %140 = vmatpush.msra.mxu0 0.0
    %141 = vmatpush.msra.mxu0 0.0
    %142 = vmatpush.msra.mxu0 0.0
    %143 = vmatpush.msra.mxu0 %v122
    %144 = vmatpush.msra.mxu0 %v121
    %145 = vmatpush.msra.mxu0 %v120
    %146 = vmatpush.msra.mxu0 %v119
    %147 = vmatmul.f32.gmra.mxu0 %v129
    %v148 = vpop.f32.mrf.mxu0
    %v149 = vadd.f32 %v124, %v148
    %150 = vdwg.mxu0
    %152 = vst.msk [vmem:[#allocation2] sm:$0xff] %vm128, %v127
    %vm153 = vcmask 523520
    %154 = vst.msk [vmem:[#allocation2] sm:$0xff] %vm153, %v112
    %156 = vrot.lane.b32.xlu0 %v149, 64
    %v157 = vpop.permute.xlu0 %156
    %vm159 = vcmask 540160
    %160 = vst.msk [vmem:[#allocation2] sm:$0xff] %vm159, %v157
    // Predicated region
    $region18: #{tpu_custom_call.1} parent=1 // pred_check
      _
    $region19: #{tpu_custom_call.1} parent=1 // pred_check_branch
      %162 = sbr.rel (0) target = $region21
    $region20: #{tpu_custom_call.1} parent=1 // pred_region
      %164 = vsyncadd [#allocation3], 0
      %s166 = sshll.u32 [#allocation2], 4
      %s167 = int_to_ptr.vmem [resolvable:$true] %s166
      %s168 = sshll.u32 %s4, 4
      %s169 = int_to_ptr.hbm [resolvable:$true] %s168
      %171 = dma.vmem_to_hbm [thread:$0]  %s167, 128, %s169, [#allocation3]
    $region21: #{tpu_custom_call.1} parent=1 // pred_fallthru
      _
    // Predicated region
    $region22: #{tpu_custom_call.1} parent=1 // pred_check
      _
    $region23: #{tpu_custom_call.1} parent=1 // pred_check_branch
      %173 = sbr.rel (0) target = $region25
    $region24: #{tpu_custom_call.1} parent=1 // pred_region
      %175 = dma.done [#allocation3], 128
    $region25: #{tpu_custom_call.1} parent=1 // pred_fallthru
      _
    %176 = vsyncpa [#allocation3], 1

</llo_original>
